<compile_context>
chip_gen: v5e
topology: v5e:2x2
jax: 0.10.0
libtpu: 0.0.40
codegen_flags: <defaults>
</compile_context>

<pallas_src>
import functools

import jax
import jax.numpy as jnp
from jax.experimental import pallas as pl
from jax.experimental.pallas import tpu as pltpu

EPS = 1e-6
_VMEM_LIMIT = 48 * 1024 * 1024  # conservative across v5e/v6e (128 MiB) and v7x (64 MiB)


def _round_up(n, m):
    return (n + m - 1) // m * m


def _vmem_bytes(tm, tk, d):
    """Rough double-buffered working-set estimate for one grid step."""
    xk = 2 * tm * tk * 4        # x K-chunk (f32), double-buffered
    wb = 2 * tk * d * 2         # weight K-chunk (bf16), double-buffered
    xr = 2 * tm * d * 4         # residual x row tile (f32), double-buffered
    ob = 2 * tm * d * 4         # output tile (f32), double-buffered
    pp = 2 * 8 * d * 4          # packed params (3, D) padded to 8 sublanes
    ac = tm * d * 4             # f32 accumulator scratch
    return xk + wb + xr + ob + pp + ac


def _choose_tiles(rows, d, tile_rows, tile_k):
    """Pick (tm, tk) respecting (8,128) tiling, exact divisibility and VMEM."""
    tm = min(tile_rows, _round_up(rows, 8))
    tm = max(8, _round_up(tm, 8))
    if d % 128 == 0:
        tk = _round_up(min(tile_k, d), 128)
        if d % tk != 0:
            tk = d                      # keep K blocks exact (no partial reads)
    else:
        tk = d                          # non-lane-aligned d: single K block
    while _vmem_bytes(tm, tk, d) > _VMEM_LIMIT and tm > 8:
        tm = max(8, _round_up(tm // 2, 8))
    while (_vmem_bytes(tm, tk, d) > _VMEM_LIMIT and tk > 128
           and d % (tk // 2) == 0 and (tk // 2) % 128 == 0):
        tk //= 2
    return tm, tk


def sublayer_connection_kernel(xk_ref, w_ref, xres_ref, p_ref, o_ref, acc_ref):
    k = pl.program_id(1)

    @pl.when(k == 0)
    def _():
        acc_ref[...] = jnp.zeros_like(acc_ref)

    # ----- stand-in sublayer: per-position linear on the MXU (bf16 in, f32 acc)
    acc_ref[...] += jnp.dot(
        xk_ref[...].astype(jnp.bfloat16), w_ref[...],
        preferred_element_type=jnp.float32)

    @pl.when(k == pl.num_programs(1) - 1)
    def _():
        bias = p_ref[0:1, :]                               # (1, D)
        a2 = p_ref[1:2, :]
        b2 = p_ref[2:3, :]
        y = acc_ref[...] + bias                            # (TM, D), f32
        d = y.shape[-1]
        # LayerNorm with torch.std semantics: unbiased (D-1), eps on the std.
        mean = jnp.mean(y, axis=-1, keepdims=True)         # (TM, 1)
        diff = y - mean
        var_unbiased = jnp.sum(diff * diff, axis=-1, keepdims=True) / (d - 1)
        std = jnp.sqrt(var_unbiased)
        inv = pl.reciprocal(std + EPS, approx=True)        # EUP slot, frees VALU
        # residual: out = x + a_2 * (y - mean) / (std + eps) + b_2
        o_ref[...] = xres_ref[...] + diff * (a2 * inv) + b2


@functools.partial(jax.jit, static_argnames=("tile_rows", "tile_k"))
def sublayer_connection_forward(x, w_bf16, b, a2, b2, *,
                                tile_rows=512, tile_k=512):
    """x: [B, S, D] f32; w_bf16: [D, D] bf16; b/a2/b2: [1, D] f32."""
    B, S, D = x.shape
    rows = B * S
    x2d = x.reshape(rows, D)

    tm, tk = _choose_tiles(rows, D, tile_rows, tile_k)
    padded_rows = _round_up(rows, tm)
    if padded_rows != rows:
        x2d = jnp.pad(x2d, ((0, padded_rows - rows), (0, 0)))

    params = jnp.concatenate(
        [b.reshape(1, D), a2.reshape(1, D), b2.reshape(1, D)], axis=0)  # (3, D)

    grid = (padded_rows // tm, D // tk)

    out2d = pl.pallas_call(
        sublayer_connection_kernel,
        out_shape=jax.ShapeDtypeStruct((padded_rows, D), jnp.float32),
        grid=grid,
        in_specs=[
            pl.BlockSpec((tm, tk), lambda i, k: (i, k)),   # x K-chunks (matmul)
            pl.BlockSpec((tk, D), lambda i, k: (k, 0)),    # W K-chunks (bf16)
            pl.BlockSpec((tm, D), lambda i, k: (i, 0)),    # x row tile (residual)
            pl.BlockSpec((3, D), lambda i, k: (0, 0)),     # bias / a_2 / b_2
        ],
        out_specs=pl.BlockSpec((tm, D), lambda i, k: (i, 0)),
        scratch_shapes=[pltpu.VMEM((tm, D), jnp.float32)],
        compiler_params=pltpu.CompilerParams(
            dimension_semantics=("parallel", "arbitrary"),
            vmem_limit_bytes=_VMEM_LIMIT,
        ),
    )(x2d, w_bf16, x2d, params)

    return out2d[:rows].reshape(B, S, D)


def reference_forward(x, w, b, a2, b2):
    """Pure-JAX f32 reference of SubLayerConnection with the stand-in sublayer."""
    y = jnp.einsum("bsd,de->bse", x, w) + b[0]
    d = y.shape[-1]
    mean = jnp.mean(y, axis=-1, keepdims=True)
    diff = y - mean
    std = jnp.sqrt(jnp.sum(diff * diff, axis=-1, keepdims=True) / (d - 1))
    return x + a2[0] * diff / (std + EPS) + b2[0]


if __name__ == "__main__":
    # Small demo shapes: batch=2, seq=8, d_model=128 (multiple of 128 so the
    # output stores are lane-dense; production d_model should also be %128==0).
    B, S, D = 2, 8, 128

    key = jax.random.PRNGKey(0)
    kx, kw, kb = jax.random.split(key, 3)

    x = jax.random.normal(kx, (B, S, D), dtype=jnp.float32)
    w = jax.random.normal(kw, (D, D), dtype=jnp.float32) * (1.0 / jnp.sqrt(D))
    b = jax.random.normal(kb, (1, D), dtype=jnp.float32) * 0.1
    a2 = jnp.ones((1, D), dtype=jnp.float32)    # LayerNorm a_2 = ones
    b2 = jnp.zeros((1, D), dtype=jnp.float32)   # LayerNorm b_2 = zeros

    # Weight stored/fed in bf16 (MXU input dtype); the f32 reference uses the
    # same (quantized) weight values so only the bf16 x-cast + approx
    # reciprocal differ between kernel and reference.
    w_bf16 = w.astype(jnp.bfloat16)

    out = sublayer_connection_forward(x, w_bf16, b, a2, b2)
    out = jax.block_until_ready(out)

    ref = reference_forward(x, w_bf16.astype(jnp.float32), b, a2, b2)
    assert out.shape == (B, S, D)
    assert jnp.allclose(out, ref, atol=2e-2, rtol=2e-2), (
        "max abs err = %f" % float(jnp.max(jnp.abs(out - ref))))

    print("KERNEL_OK")
</pallas_src>

<mosaic_0001>
module attributes {stable_mosaic.version = 11 : i64} {
  func.func @sublayer_connection_kernel(%arg0: i32, %arg1: i32, %arg2: memref<16x128xf32, #tpu.memory_space<vmem>>, %arg3: memref<128x128xbf16, #tpu.memory_space<vmem>>, %arg4: memref<16x128xf32, #tpu.memory_space<vmem>>, %arg5: memref<3x128xf32, #tpu.memory_space<vmem>>, %arg6: memref<16x128xf32, #tpu.memory_space<vmem>>, %arg7: memref<16x128xf32, #tpu.memory_space<vmem>>) attributes {dimension_semantics = [#tpu.dimension_semantics<parallel>, #tpu.dimension_semantics<arbitrary>], iteration_bounds = array<i64: 1, 1>, scalar_prefetch = 0 : i64, scratch_operands = 1 : i64, tpu.core_type = #tpu.core_type<tc>, window_params = [{transform_indices = @transform_0, window_bounds = array<i64: 16, 128>}, {transform_indices = @transform_1, window_bounds = array<i64: 128, 128>}, {transform_indices = @transform_2, window_bounds = array<i64: 16, 128>}, {pipeline_mode = #tpu.pipeline_mode<synchronous>, transform_indices = @transform_3, window_bounds = array<i64: 3, 128>}, {transform_indices = @transform_4, window_bounds = array<i64: 16, 128>}]} {
    %c0_i32 = arith.constant 0 : i32
    %0 = arith.cmpi eq, %arg1, %c0_i32 : i32
    %1 = arith.extui %0 : i1 to i32
    %c0_i32_0 = arith.constant 0 : i32
    %2 = arith.cmpi ne, %1, %c0_i32_0 : i32
    scf.if %2 {
      %cst_10 = arith.constant 0.000000e+00 : f32
      %13 = vector.broadcast %cst_10 : f32 to vector<16x128xf32>
      %c0_11 = arith.constant 0 : index
      %c0_12 = arith.constant 0 : index
      %14 = vector.load %arg7[%c0_11, %c0_12] : memref<16x128xf32, #tpu.memory_space<vmem>>, vector<16x128xf32>
      tpu.vector_store %arg7[%c0_11, %c0_12], %13 {strides = array<i32>} : memref<16x128xf32, #tpu.memory_space<vmem>>, vector<16x128xf32>,
    } else {
    }
    %c0 = arith.constant 0 : index
    %c0_1 = arith.constant 0 : index
    %3 = vector.load %arg7[%c0, %c0_1] : memref<16x128xf32, #tpu.memory_space<vmem>>, vector<16x128xf32>
    %c0_2 = arith.constant 0 : index
    %c0_3 = arith.constant 0 : index
    %4 = vector.load %arg2[%c0_2, %c0_3] : memref<16x128xf32, #tpu.memory_space<vmem>>, vector<16x128xf32>
    %5 = arith.truncf %4 : vector<16x128xf32> to vector<16x128xbf16>
    %c0_4 = arith.constant 0 : index
    %c0_5 = arith.constant 0 : index
    %6 = vector.load %arg3[%c0_4, %c0_5] : memref<128x128xbf16, #tpu.memory_space<vmem>>, vector<128x128xbf16>
    %cst = arith.constant dense<0.000000e+00> : vector<16x128xf32>
    %7 = tpu.matmul %5, %6, %cst {dimension_numbers = #tpu.dot_dimension_numbers<[1], [0], [0], [1], [0, 0, 1, 1], [], []>} : vector<16x128xbf16>, vector<128x128xbf16>, vector<16x128xf32> -> vector<16x128xf32>
    %8 = arith.addf %3, %7 : vector<16x128xf32>
    %c0_6 = arith.constant 0 : index
    %c0_7 = arith.constant 0 : index
    %9 = vector.load %arg7[%c0_6, %c0_7] : memref<16x128xf32, #tpu.memory_space<vmem>>, vector<16x128xf32>
    tpu.vector_store %arg7[%c0_6, %c0_7], %8 {strides = array<i32>} : memref<16x128xf32, #tpu.memory_space<vmem>>, vector<16x128xf32>,
    %c0_i32_8 = arith.constant 0 : i32
    %10 = arith.cmpi eq, %arg1, %c0_i32_8 : i32
    %11 = arith.extui %10 : i1 to i32
    %c0_i32_9 = arith.constant 0 : i32
    %12 = arith.cmpi ne, %11, %c0_i32_9 : i32
    scf.if %12 {
      %c0_10 = arith.constant 0 : index
      %c0_11 = arith.constant 0 : index
      %13 = vector.load %arg5[%c0_10, %c0_11] : memref<3x128xf32, #tpu.memory_space<vmem>>, vector<1x128xf32>
      %c1 = arith.constant 1 : index
      %c0_12 = arith.constant 0 : index
      %14 = vector.load %arg5[%c1, %c0_12] : memref<3x128xf32, #tpu.memory_space<vmem>>, vector<1x128xf32>
      %c2 = arith.constant 2 : index
      %c0_13 = arith.constant 0 : index
      %15 = vector.load %arg5[%c2, %c0_13] : memref<3x128xf32, #tpu.memory_space<vmem>>, vector<1x128xf32>
      %c0_14 = arith.constant 0 : index
      %c0_15 = arith.constant 0 : index
      %16 = vector.load %arg7[%c0_14, %c0_15] : memref<16x128xf32, #tpu.memory_space<vmem>>, vector<16x128xf32>
      %17 = vector.broadcast %13 : vector<1x128xf32> to vector<16x128xf32>
      %18 = arith.addf %16, %17 : vector<16x128xf32>
      %cst_16 = arith.constant dense<0.000000e+00> : vector<16xf32>
      %19 = vector.multi_reduction <add>, %18, %cst_16 [1] : vector<16x128xf32> to vector<16xf32>
      %20 = vector.shape_cast %19 : vector<16xf32> to vector<16x1xf32>
      %cst_17 = arith.constant 1.280000e+02 : f32
      %21 = vector.broadcast %cst_17 : f32 to vector<16x1xf32>
      %22 = arith.divf %20, %21 : vector<16x1xf32>
      %23 = vector.broadcast %22 : vector<16x1xf32> to vector<16x128xf32>
      %24 = arith.subf %18, %23 : vector<16x128xf32>
      %25 = arith.mulf %24, %24 : vector<16x128xf32>
      %cst_18 = arith.constant dense<0.000000e+00> : vector<16xf32>
      %26 = vector.multi_reduction <add>, %25, %cst_18 [1] : vector<16x128xf32> to vector<16xf32>
      %27 = vector.shape_cast %26 : vector<16xf32> to vector<16x1xf32>
      %cst_19 = arith.constant 1.270000e+02 : f32
      %28 = vector.broadcast %cst_19 : f32 to vector<16x1xf32>
      %29 = arith.divf %27, %28 : vector<16x1xf32>
      %30 = math.sqrt %29 : vector<16x1xf32>
      %cst_20 = arith.constant 9.99999997E-7 : f32
      %31 = vector.broadcast %cst_20 : f32 to vector<16x1xf32>
      %32 = arith.addf %30, %31 : vector<16x1xf32>
      %33 = tpu.reciprocal %32 {approx = true} : vector<16x1xf32> -> vector<16x1xf32>
      %c0_21 = arith.constant 0 : index
      %c0_22 = arith.constant 0 : index
      %34 = vector.load %arg4[%c0_21, %c0_22] : memref<16x128xf32, #tpu.memory_space<vmem>>, vector<16x128xf32>
      %35 = vector.broadcast %14 : vector<1x128xf32> to vector<16x128xf32>
      %36 = vector.broadcast %33 : vector<16x1xf32> to vector<16x128xf32>
      %37 = arith.mulf %35, %36 : vector<16x128xf32>
      %38 = arith.mulf %24, %37 : vector<16x128xf32>
      %39 = arith.addf %34, %38 : vector<16x128xf32>
      %40 = vector.broadcast %15 : vector<1x128xf32> to vector<16x128xf32>
      %41 = arith.addf %39, %40 : vector<16x128xf32>
      %c0_23 = arith.constant 0 : index
      %c0_24 = arith.constant 0 : index
      %42 = vector.load %arg6[%c0_23, %c0_24] : memref<16x128xf32, #tpu.memory_space<vmem>>, vector<16x128xf32>
      tpu.vector_store %arg6[%c0_23, %c0_24], %41 {strides = array<i32>} : memref<16x128xf32, #tpu.memory_space<vmem>>, vector<16x128xf32>,
    } else {
    }
    return
  }
  func.func @transform_0(%arg0: i32, %arg1: i32) -> (i32, i32) {
    %c0_i32 = arith.constant 0 : i32
    return %arg0, %arg1 : i32, i32
  }
  func.func @transform_1(%arg0: i32, %arg1: i32) -> (i32, i32) {
    %c0_i32 = arith.constant 0 : i32
    %c0_i32_0 = arith.constant 0 : i32
    return %arg1, %c0_i32 : i32, i32
  }
  func.func @transform_2(%arg0: i32, %arg1: i32) -> (i32, i32) {
    %c0_i32 = arith.constant 0 : i32
    %c0_i32_0 = arith.constant 0 : i32
    return %arg0, %c0_i32 : i32, i32
  }
  func.func @transform_3(%arg0: i32, %arg1: i32) -> (i32, i32) {
    %c0_i32 = arith.constant 0 : i32
    %c0_i32_0 = arith.constant 0 : i32
    %c0_i32_1 = arith.constant 0 : i32
    return %c0_i32, %c0_i32_0 : i32, i32
  }
  func.func @transform_4(%arg0: i32, %arg1: i32) -> (i32, i32) {
    %c0_i32 = arith.constant 0 : i32
    %c0_i32_0 = arith.constant 0 : i32
    return %arg0, %c0_i32 : i32, i32
  }
}

</mosaic_0001>

<llo_original>
// kernel: sublayer_connection_forward.1
$region0: #{sublayer_connection_forward.1}
  #allocation0 [shape = 'u32[]', space=smem, size = 0x4, offset = 0x4, fixed_abs, tag = 'smem constant byte address 0x4 - core index']
  #allocation1 [shape = 'u32[72,128]{1,0:T(1,128)}', space=vmem, size = 0x9000, scoped, tag = 'internal scratch']
  #allocation2 [shape = 'f32[16,128]{1,0:T(8,128)}', space=vmem, size = 0x2000, scoped, tag = 'scratch operand']
  %s0 = inlined_call_operand.hbm [shape: f32[16,128], index: 0, kind: input, shape index: {}, may-alias: {0,2}]
  %s1 = inlined_call_operand.hbm [shape: bf16[128,128], index: 1, kind: input, shape index: {}]
  %s2 = inlined_call_operand.hbm [shape: f32[16,128], index: 2, kind: input, shape index: {}, may-alias: {0,2}]
  %s3 = inlined_call_operand.vmem [shape: f32[3,128], index: 3, kind: input, shape index: {}]
  %s4 = inlined_call_operand.hbm [shape: f32[16,128], index: 4, kind: output, shape index: {}]
  %s5 = sld [smem:[#allocation0]]
  $region46: #{sublayer_connection_forward.1} parent=0
    _
  %s7 = ssub.s32 1, %s5
  %s8 = scalar_select 0, %s7, %s5
  $region1: #{sublayer_connection_forward.1} parent=0
    #allocation3 [shape = 'u8[8192]{0}', space=vmem, size = 0x2000, scoped, tag = 'input window, operand 0, single buffered']
    #allocation4 [shape = 's32[1]{0}', space=sflag, size = 0x4, scoped, tag = 'scoped memory for sublayer_connection_forward.1']
    #allocation5 [shape = 's32[1]{0}', space=sflag, size = 0x4, scoped, tag = 'scoped memory for sublayer_connection_forward.1']
    #allocation6 [shape = 'u8[32768]{0}', space=vmem, size = 0x8000, scoped, tag = 'input window, operand 1, single buffered']
    #allocation7 [shape = 's32[1]{0}', space=sflag, size = 0x4, scoped, tag = 'scoped memory for sublayer_connection_forward.1']
    #allocation8 [shape = 'u8[8192]{0}', space=vmem, size = 0x2000, scoped, tag = 'input window, operand 2, single buffered']
    #allocation9 [shape = 'u8[8192]{0}', space=vmem, size = 0x2000, scoped, tag = 'output window, operand 0, single buffered']
    %9 = vsyncpa [#allocation4], 0
    %10 = vsyncpa [#allocation7], 0
    %11 = vsyncpa [#allocation5], 0
    // Predicated region
    $region2: #{sublayer_connection_forward.1} parent=1 // pred_check
      _
    $region3: #{sublayer_connection_forward.1} parent=1 // pred_check_branch
      %13 = sbr.rel (0) target = $region5
    $region4: #{sublayer_connection_forward.1} parent=1 // pred_region
      %15 = vsyncadd [#allocation4], 0
      %s16 = sshll.u32 %s0, 4
      %s17 = int_to_ptr.hbm [resolvable:$true] %s16
      %s18 = sshll.u32 [#allocation3], 4
      %s19 = int_to_ptr.vmem [resolvable:$true] %s18
      %24 = dma.hbm_to_vmem [thread:$0]  %s17, 256, %s19, [#allocation4], 128, 128, 8
    $region5: #{sublayer_connection_forward.1} parent=1 // pred_fallthru
      _
    // Predicated region
    $region6: #{sublayer_connection_forward.1} parent=1 // pred_check
      _
    $region7: #{sublayer_connection_forward.1} parent=1 // pred_check_branch
      %26 = sbr.rel (0) target = $region9
    $region8: #{sublayer_connection_forward.1} parent=1 // pred_region
      %28 = vsyncadd [#allocation7], 0
      %s29 = sshll.u32 %s1, 4
      %s30 = int_to_ptr.hbm [resolvable:$true] %s29
      %s31 = sshll.u32 [#allocation6], 4
      %s32 = int_to_ptr.vmem [resolvable:$true] %s31
      %37 = dma.hbm_to_vmem [thread:$0]  %s30, 1024, %s32, [#allocation7], 64, 64, 4
    $region9: #{sublayer_connection_forward.1} parent=1 // pred_fallthru
      _
    // Predicated region
    $region10: #{sublayer_connection_forward.1} parent=1 // pred_check
      _
    $region11: #{sublayer_connection_forward.1} parent=1 // pred_check_branch
      %39 = sbr.rel (0) target = $region13
    $region12: #{sublayer_connection_forward.1} parent=1 // pred_region
      %41 = vsyncadd [#allocation7], 0
      %s42 = sshll.u32 %s2, 4
      %s43 = int_to_ptr.hbm [resolvable:$true] %s42
      %s44 = sshll.u32 [#allocation8], 4
      %s45 = int_to_ptr.vmem [resolvable:$true] %s44
      %50 = dma.hbm_to_vmem [thread:$0]  %s43, 256, %s45, [#allocation7], 128, 128, 8
    $region13: #{sublayer_connection_forward.1} parent=1 // pred_fallthru
      _
    // Predicated region
    $region14: #{sublayer_connection_forward.1} parent=1 // pred_check
      _
    $region15: #{sublayer_connection_forward.1} parent=1 // pred_check_branch
      %52 = sbr.rel (0) target = $region17
    $region16: #{sublayer_connection_forward.1} parent=1 // pred_region
      _
    $region17: #{sublayer_connection_forward.1} parent=1 // pred_fallthru
      _
    // Predicated region
    $region18: #{sublayer_connection_forward.1} parent=1 // pred_check
      _
    $region19: #{sublayer_connection_forward.1} parent=1 // pred_check_branch
      %54 = sbr.rel (0) target = $region21
    $region20: #{sublayer_connection_forward.1} parent=1 // pred_region
      %56 = dma.done [#allocation4], 256
    $region21: #{sublayer_connection_forward.1} parent=1 // pred_fallthru
      _
    // Predicated region
    $region22: #{sublayer_connection_forward.1} parent=1 // pred_check
      _
    $region23: #{sublayer_connection_forward.1} parent=1 // pred_check_branch
      %58 = sbr.rel (0) target = $region25
    $region24: #{sublayer_connection_forward.1} parent=1 // pred_region
      %60 = dma.done [#allocation7], 1024
    $region25: #{sublayer_connection_forward.1} parent=1 // pred_fallthru
      _
    // Predicated region
    $region26: #{sublayer_connection_forward.1} parent=1 // pred_check
      _
    $region27: #{sublayer_connection_forward.1} parent=1 // pred_check_branch
      %62 = sbr.rel (0) target = $region29
    $region28: #{sublayer_connection_forward.1} parent=1 // pred_region
      %64 = dma.done [#allocation7], 256
    $region29: #{sublayer_connection_forward.1} parent=1 // pred_fallthru
      _
    %p65 = scmp.eq.s32.totalorder 0, 0
    // Predicated region
    $region30: #{sublayer_connection_forward.1} parent=1 // pred_check
      %p66 = pneg %p65
    $region31: #{sublayer_connection_forward.1} parent=1 // pred_check_branch
      %68 = sbr.rel (%p66) target = $region33
    $region32: #{sublayer_connection_forward.1} parent=1 // pred_region
      %69 = vst [vmem:[#allocation2] sm:$0xff] 0.0
      %70 = vst [vmem:[#allocation2 + $0x8] sm:$0xff] 0.0
    $region33: #{sublayer_connection_forward.1} parent=1 // pred_fallthru
      _
    %v71 = vld [vmem:[#allocation2] sm:$0xff]
    %v72 = vld [vmem:[#allocation2 + $0x8] sm:$0xff]
    %v73 = vld [vmem:[#allocation3] sm:$0xff]
    %v74 = vld [vmem:[#allocation3 + $0x8] sm:$0xff]
    %v75 = vpack.c.bf16 %v74, %v73
    %v76 = vld [vmem:[#allocation6] sm:$0xf]
    %v77 = vld [vmem:[#allocation6 + $0x4] sm:$0xf]
    %v78 = vld [vmem:[#allocation6 + $0x8] sm:$0xf]
    %v79 = vld [vmem:[#allocation6 + $0xc] sm:$0xf]
    %v80 = vld [vmem:[#allocation6 + $0x10] sm:$0xf]
    %v81 = vld [vmem:[#allocation6 + $0x14] sm:$0xf]
    %v82 = vld [vmem:[#allocation6 + $0x18] sm:$0xf]
    %v83 = vld [vmem:[#allocation6 + $0x1c] sm:$0xf]
    %v84 = vld [vmem:[#allocation6 + $0x20] sm:$0xf]
    %v85 = vld [vmem:[#allocation6 + $0x24] sm:$0xf]
    %v86 = vld [vmem:[#allocation6 + $0x28] sm:$0xf]
    %v87 = vld [vmem:[#allocation6 + $0x2c] sm:$0xf]
    %v88 = vld [vmem:[#allocation6 + $0x30] sm:$0xf]
    %v89 = vld [vmem:[#allocation6 + $0x34] sm:$0xf]
    %v90 = vld [vmem:[#allocation6 + $0x38] sm:$0xf]
    %v91 = vld [vmem:[#allocation6 + $0x3c] sm:$0xf]
    %v108 = vunpack.c.l.b16 %v76
    %v109 = vunpack.c.l.b16 %v77
    %v110 = vunpack.c.l.b16 %v78
    %v111 = vunpack.c.l.b16 %v79
    %v112 = vunpack.c.l.b16 %v80
    %v113 = vunpack.c.l.b16 %v81
    %v114 = vunpack.c.l.b16 %v82
    %v115 = vunpack.c.l.b16 %v83
    %v116 = vunpack.c.l.b16 %v84
    %v117 = vunpack.c.l.b16 %v85
    %v118 = vunpack.c.l.b16 %v86
    %v119 = vunpack.c.l.b16 %v87
    %v120 = vunpack.c.l.b16 %v88
    %v121 = vunpack.c.l.b16 %v89
    %v122 = vunpack.c.l.b16 %v90
    %v123 = vunpack.c.l.b16 %v91
    %v124 = vpack.c.b16 %v109, %v108
    %v125 = vpack.c.b16 %v111, %v110
    %v126 = vpack.c.b16 %v113, %v112
    %v127 = vpack.c.b16 %v115, %v114
    %v128 = vpack.c.b16 %v117, %v116
    %v129 = vpack.c.b16 %v119, %v118
    %v130 = vpack.c.b16 %v121, %v120
    %v131 = vpack.c.b16 %v123, %v122
    %140 = vmatpush.bf16.msra.mxu0 %v131
    %141 = vmatpush.bf16.msra.mxu0 %v130
    %142 = vmatpush.bf16.msra.mxu0 %v129
    %143 = vmatpush.bf16.msra.mxu0 %v128
    %144 = vmatpush.bf16.msra.mxu0 %v127
    %145 = vmatpush.bf16.msra.mxu0 %v126
    %146 = vmatpush.bf16.msra.mxu0 %v125
    %147 = vmatpush.bf16.msra.mxu0 %v124
    %148 = vmatmul.bf16.gmra.mxu0 %v75
    %v149 = vpop.f32.mrf.mxu0
    %v150 = vadd.f32 0.0, %v149
    %v151 = vpop.f32.mrf.mxu0
    %v152 = vadd.f32 0.0, %v151
    %153 = vdwg.mxu0
    %v154 = vadd.f32 %v71, %v150
    %v155 = vadd.f32 %v72, %v152
    %156 = vst [vmem:[#allocation2] sm:$0xff] %v154
    %157 = vst [vmem:[#allocation2 + $0x8] sm:$0xff] %v155
    // Predicated region
    $region34: #{sublayer_connection_forward.1} parent=1 // pred_check
      %p158 = pneg %p65
    $region35: #{sublayer_connection_forward.1} parent=1 // pred_check_branch
      %160 = sbr.rel (%p158) target = $region37
    $region36: #{sublayer_connection_forward.1} parent=1 // pred_region
      %v161 = vld [vmem:[%s3] sm:$0x1]
      %v162 = vld [vmem:[%s3 + $0x1] sm:$0x1]
      %v163 = vld [vmem:[%s3 + $0x2] sm:$0x1]
      %v164 = vld [vmem:[#allocation2] sm:$0xff]
      %v165 = vld [vmem:[#allocation2 + $0x8] sm:$0xff]
      %v166 = vperm.slane %v161, 0
      %v167 = vadd.f32 %v164, %v166
      %v168 = vadd.f32 %v165, %v166
      %169 = vadd.xlane.f32.xlu0 %v167
      %v170 = vpop.xlane.xlu0 %169
      %171 = vadd.xlane.f32.xlu0 %v168
      %v172 = vpop.xlane.xlu0 %171
      %v173 = vrcp.pop 128.0
      %v174 = vmul.f32 128.0, %v173
      %v175 = vsub.f32 1.0, %v174
      %v176 = vmul.f32 %v173, %v175
      %v177 = vadd.f32 %v173, %v176
      %vm178 = vweird.f32 %v173
      %v179 = vsel %vm178, %v173, %v177
      %v180 = vmul.f32 %v170, %v179
      %v181 = vmul.f32 %v172, %v179
      %v182 = vsub.f32 %v167, %v180
      %v183 = vsub.f32 %v168, %v181
      %v184 = vmul.f32 %v182, %v182
      %v185 = vmul.f32 %v183, %v183
      %186 = vadd.xlane.f32.xlu0 %v184
      %v187 = vpop.xlane.xlu0 %186
      %188 = vadd.xlane.f32.xlu0 %v185
      %v189 = vpop.xlane.xlu0 %188
      %v190 = vrcp.pop 127.0
      %v191 = vmul.f32 127.0, %v190
      %v192 = vsub.f32 1.0, %v191
      %v193 = vmul.f32 %v190, %v192
      %v194 = vadd.f32 %v190, %v193
      %vm195 = vweird.f32 %v190
      %v196 = vsel %vm195, %v190, %v194
      %v197 = vmul.f32 %v187, %v196
      %v198 = vmul.f32 %v189, %v196
      %v199 = vrsqrt.pop %v197
      %v200 = vmul.f32 %v199, %v197
      %v201 = vmul.f32 %v200, %v199
      %v202 = vmul.f32 0.5, %v201
      %v203 = vsub.f32 1.5, %v202
      %v204 = vmul.f32 %v199, %v203
      %v205 = vmul.f32 %v197, %v204
      %vm206 = vcmp.eq.f32.partialorder %v197, inf
      %v207 = vsel %vm206, %v197, %v205
      %vm208 = vcmp.eq.f32.partialorder %v197, 0.0
      %v209 = vand.u32 %v197, 2147483648
      %v210 = vsel %vm208, %v209, %v207
      %v211 = vrsqrt.pop %v198
      %v212 = vmul.f32 %v211, %v198
      %v213 = vmul.f32 %v212, %v211
      %v214 = vmul.f32 0.5, %v213
      %v215 = vsub.f32 1.5, %v214
      %v216 = vmul.f32 %v211, %v215
      %v217 = vmul.f32 %v198, %v216
      %vm218 = vcmp.eq.f32.partialorder %v198, inf
      %v219 = vsel %vm218, %v198, %v217
      %vm220 = vcmp.eq.f32.partialorder %v198, 0.0
      %v221 = vand.u32 %v198, 2147483648
      %v222 = vsel %vm220, %v221, %v219
      %v223 = vadd.f32 %v210, 1e-06
      %v224 = vadd.f32 %v222, 1e-06
      %v225 = vrcp.pop %v223
      %v226 = vrcp.pop %v224
      %v227 = vld [vmem:[#allocation8] sm:$0xff]
      %v228 = vld [vmem:[#allocation8 + $0x8] sm:$0xff]
      %v229 = vperm.slane %v162, 0
      %v230 = vmul.f32 %v229, %v225
      %v231 = vmul.f32 %v229, %v226
      %v232 = vmul.f32 %v182, %v230
      %v233 = vmul.f32 %v183, %v231
      %v234 = vadd.f32 %v227, %v232
      %v235 = vadd.f32 %v228, %v233
      %v236 = vperm.slane %v163, 0
      %v237 = vadd.f32 %v234, %v236
      %v238 = vadd.f32 %v235, %v236
      %239 = vst [vmem:[#allocation9] sm:$0xff] %v237
      %240 = vst [vmem:[#allocation9 + $0x8] sm:$0xff] %v238
    $region37: #{sublayer_connection_forward.1} parent=1 // pred_fallthru
      _
    // Predicated region
    $region38: #{sublayer_connection_forward.1} parent=1 // pred_check
      _
    $region39: #{sublayer_connection_forward.1} parent=1 // pred_check_branch
      %242 = sbr.rel (0) target = $region41
    $region40: #{sublayer_connection_forward.1} parent=1 // pred_region
      %244 = vsyncadd [#allocation5], 0
      %s245 = sshll.u32 [#allocation9], 4
      %s246 = int_to_ptr.vmem [resolvable:$true] %s245
      %s247 = sshll.u32 %s4, 4
      %s248 = int_to_ptr.hbm [resolvable:$true] %s247
      %253 = dma.vmem_to_hbm [thread:$0]  %s246, 256, %s248, [#allocation5], 128, 128, 8
    $region41: #{sublayer_connection_forward.1} parent=1 // pred_fallthru
      _
    // Predicated region
    $region42: #{sublayer_connection_forward.1} parent=1 // pred_check
      _
    $region43: #{sublayer_connection_forward.1} parent=1 // pred_check_branch
      %255 = sbr.rel (0) target = $region45
    $region44: #{sublayer_connection_forward.1} parent=1 // pred_region
      %257 = dma.done [#allocation5], 256
    $region45: #{sublayer_connection_forward.1} parent=1 // pred_fallthru
      _
    %258 = vsyncpa [#allocation4], 1
    %259 = vsyncpa [#allocation7], 1
    %260 = vsyncpa [#allocation5], 1

</llo_original>
